<compile_context>
chip_gen: v6e
topology: v6e:2x2x1
jax: 0.10.0
libtpu: 0.0.40
codegen_flags: <defaults>
</compile_context>

<pallas_src>
import jax
import jax.numpy as jnp
from jax.experimental import pallas as pl
from jax.experimental.pallas import tpu as pltpu


def _logreg_kernel(x_ref, wt_ref, b_ref, o_ref):
    # x_ref : (TN, P) VMEM tile (native dtype)
    # wt_ref: (P, 1)  VMEM, pre-transposed weights (resident across grid)
    # b_ref : (1, 1)  SMEM scalar bias
    # o_ref : (TN, 1) VMEM output tile, f32
    logits = jnp.dot(x_ref[...], wt_ref[...],
                     preferred_element_type=jnp.float32)     # MXU, f32 acc
    logits = logits + b_ref[0, 0]                             # scalar bias
    o_ref[...] = jax.nn.sigmoid(logits).astype(o_ref.dtype)   # VPU/EUP


def logistic_regression_forward(x, w, b, *, max_tile_rows=1024,
                                vmem_budget_bytes=12 * 1024 * 1024):
    """x: (N, P), w: (1, P), b: (1,) -> (N, 1) float32."""
    n, p = x.shape

    # One-time host/XLA-side prep (tiny arrays): pre-transposed weight, scalar bias.
    wt = jnp.transpose(w.reshape(1, p)).astype(x.dtype)       # (P, 1)
    b_smem = b.reshape(1, 1).astype(jnp.float32)              # (1, 1) -> SMEM

    # Pick TN: multiple of 8, <= 1024, double-buffered x tile under budget.
    bytes_per = jnp.dtype(x.dtype).itemsize
    rows_fit = max(8, vmem_budget_bytes // max(1, 2 * p * bytes_per))
    tn = int(min(max_tile_rows, rows_fit))
    tn = max(8, (tn // 8) * 8)
    tn = min(tn, pl.cdiv(n, 8) * 8)

    # Pad N up to a multiple of TN (padded rows are computed then sliced away).
    n_pad = pl.cdiv(n, tn) * tn
    if n_pad != n:
        x = jnp.pad(x, ((0, n_pad - n), (0, 0)))

    grid = (n_pad // tn,)

    out = pl.pallas_call(
        _logreg_kernel,
        out_shape=jax.ShapeDtypeStruct((n_pad, 1), jnp.float32),
        grid_spec=pltpu.PrefetchScalarGridSpec(
            num_scalar_prefetch=0,
            grid=grid,
            in_specs=[
                pl.BlockSpec((tn, p), lambda i: (i, 0)),            # x tile streams
                pl.BlockSpec((p, 1), lambda i: (0, 0)),             # W^T resident
                pl.BlockSpec(memory_space=pltpu.MemorySpace.SMEM),  # bias scalar
            ],
            out_specs=pl.BlockSpec((tn, 1), lambda i: (i, 0)),
        ),
        compiler_params=pltpu.CompilerParams(
            dimension_semantics=("parallel",)),   # shard batch across TCs on v7x
    )(x, wt, b_smem)

    return out[:n] if n_pad != n else out


def _reference(x, w, b):
    return jax.nn.sigmoid(
        jnp.dot(x.astype(jnp.float32), w.astype(jnp.float32).T)
        + b.astype(jnp.float32)[None, :])


if __name__ == "__main__":
    key = jax.random.PRNGKey(0)
    k_x, k_w, k_b = jax.random.split(key, 3)

    batch, p = 8, 32

    # Deterministic "nn.Linear(p, 1)" init: U(-1/sqrt(p), 1/sqrt(p))
    bound = 1.0 / jnp.sqrt(jnp.float32(p))
    w = jax.random.uniform(k_w, (1, p), jnp.float32, -bound, bound)
    b = jax.random.uniform(k_b, (1,), jnp.float32, -bound, bound)

    x = jax.random.normal(k_x, (batch, p), jnp.float32)

    out = logistic_regression_forward(x, w, b)
    out = jax.block_until_ready(out)

    ref = _reference(x, w, b)
    assert out.shape == (batch, 1), out.shape
    assert jnp.allclose(out, ref, atol=1e-5, rtol=1e-5), (
        f"max err {jnp.max(jnp.abs(out - ref))}")

    print("KERNEL_OK")
</pallas_src>

<mosaic_0001>
module attributes {stable_mosaic.version = 11 : i64} {
  func.func @_logreg_kernel(%arg0: i32, %arg1: memref<8x32xf32, #tpu.memory_space<vmem>>, %arg2: memref<32x1xf32, #tpu.memory_space<vmem>>, %arg3: memref<1x1xf32, #tpu.memory_space<smem>>, %arg4: memref<8x1xf32, #tpu.memory_space<vmem>>) attributes {dimension_semantics = [#tpu.dimension_semantics<parallel>], iteration_bounds = array<i64: 1>, scalar_prefetch = 0 : i64, scratch_operands = 0 : i64, tpu.core_type = #tpu.core_type<tc>, window_params = [{transform_indices = @transform_0, window_bounds = array<i64: 8, 32>}, {pipeline_mode = #tpu.pipeline_mode<synchronous>, transform_indices = @transform_1, window_bounds = array<i64: 32, 1>}, {transform_indices = @transform_2, window_bounds = array<i64: 1, 1>}, {transform_indices = @transform_3, window_bounds = array<i64: 8, 1>}]} {
    %c0 = arith.constant 0 : index
    %c0_0 = arith.constant 0 : index
    %0 = vector.load %arg1[%c0, %c0_0] : memref<8x32xf32, #tpu.memory_space<vmem>>, vector<8x32xf32>
    %c0_1 = arith.constant 0 : index
    %c0_2 = arith.constant 0 : index
    %1 = vector.load %arg2[%c0_1, %c0_2] : memref<32x1xf32, #tpu.memory_space<vmem>>, vector<32x1xf32>
    %cst = arith.constant dense<0.000000e+00> : vector<8x1xf32>
    %2 = tpu.matmul %0, %1, %cst {dimension_numbers = #tpu.dot_dimension_numbers<[1], [0], [0], [1], [0, 0, 1, 1], [], []>} : vector<8x32xf32>, vector<32x1xf32>, vector<8x1xf32> -> vector<8x1xf32>
    %c0_3 = arith.constant 0 : index
    %c0_4 = arith.constant 0 : index
    %3 = memref.load %arg3[%c0_3, %c0_4] : memref<1x1xf32, #tpu.memory_space<smem>>
    %4 = vector.broadcast %3 : f32 to vector<8x1xf32>
    %5 = arith.addf %2, %4 : vector<8x1xf32>
    %6 = arith.negf %5 : vector<8x1xf32>
    %7 = math.exp %6 : vector<8x1xf32>
    %cst_5 = arith.constant 1.000000e+00 : f32
    %8 = vector.broadcast %cst_5 : f32 to vector<8x1xf32>
    %9 = arith.addf %8, %7 : vector<8x1xf32>
    %10 = arith.divf %8, %9 : vector<8x1xf32>
    %c0_6 = arith.constant 0 : index
    %c0_7 = arith.constant 0 : index
    %11 = vector.load %arg4[%c0_6, %c0_7] : memref<8x1xf32, #tpu.memory_space<vmem>>, vector<8x1xf32>
    tpu.vector_store %arg4[%c0_6, %c0_7], %10 {strides = array<i32>} : memref<8x1xf32, #tpu.memory_space<vmem>>, vector<8x1xf32>,
    return
  }
  func.func @transform_0(%arg0: i32) -> (i32, i32) {
    %c0_i32 = arith.constant 0 : i32
    %c0_i32_0 = arith.constant 0 : i32
    return %arg0, %c0_i32 : i32, i32
  }
  func.func @transform_1(%arg0: i32) -> (i32, i32) {
    %c0_i32 = arith.constant 0 : i32
    %c0_i32_0 = arith.constant 0 : i32
    %c0_i32_1 = arith.constant 0 : i32
    return %c0_i32, %c0_i32_0 : i32, i32
  }
  func.func @transform_2(%arg0: i32) -> (i32, i32) {
    %c0_i32 = arith.constant 0 : i32
    %c0_i32_0 = arith.constant 0 : i32
    %c0_i32_1 = arith.constant 0 : i32
    return %c0_i32, %c0_i32_0 : i32, i32
  }
  func.func @transform_3(%arg0: i32) -> (i32, i32) {
    %c0_i32 = arith.constant 0 : i32
    %c0_i32_0 = arith.constant 0 : i32
    return %arg0, %c0_i32 : i32, i32
  }
}

</mosaic_0001>

<llo_original>
// kernel: tpu_custom_call.1
$region0: #{tpu_custom_call.1}
  #allocation0 [shape = 'u32[]', space=smem, size = 0x4, offset = 0x4, fixed_abs, tag = 'smem constant byte address 0x4 - core index']
  #allocation1 [shape = 'u32[144,128]{1,0:T(1,128)}', space=vmem, size = 0x12000, scoped, tag = 'internal scratch']
  #allocation2 [shape = 'f32[1,1]{1,0:T(1,128)S(6)}', space=smem, size = 0x200, scoped, tag = 'scoped memory for tpu_custom_call.1']
  %s0 = inlined_call_operand.vmem [shape: f32[8,32], index: 0, kind: input, shape index: {}]
  %s1 = inlined_call_operand.vmem [shape: f32[32,1], index: 1, kind: input, shape index: {}]
  %s2 = inlined_call_operand.<no memory space> [shape: f32[1,1], index: 2, kind: input, shape index: {}]
  %s3 = inlined_call_operand.vmem [shape: f32[8,1], index: 3, kind: output, shape index: {}]
  %s4 = sld [smem:[#allocation0]]
  $region22: #{tpu_custom_call.1} parent=0
    _
  %s6 = ssub.s32 1, %s4
  %s7 = scalar_select 0, %s6, %s4
  %8 = sst [smem:[#allocation2]] %s2
  // Predicated region
  $region2: #{tpu_custom_call.1} parent=0 // pred_check
    _
  $region3: #{tpu_custom_call.1} parent=0 // pred_check_branch
    %10 = sbr.rel (0) target = $region5
  $region4: #{tpu_custom_call.1} parent=0 // pred_region
    _
  $region5: #{tpu_custom_call.1} parent=0 // pred_fallthru
    _
  // Predicated region
  $region6: #{tpu_custom_call.1} parent=0 // pred_check
    _
  $region7: #{tpu_custom_call.1} parent=0 // pred_check_branch
    %12 = sbr.rel (0) target = $region9
  $region8: #{tpu_custom_call.1} parent=0 // pred_region
    _
  $region9: #{tpu_custom_call.1} parent=0 // pred_fallthru
    _
  // Predicated region
  $region10: #{tpu_custom_call.1} parent=0 // pred_check
    _
  $region11: #{tpu_custom_call.1} parent=0 // pred_check_branch
    %14 = sbr.rel (0) target = $region13
  $region12: #{tpu_custom_call.1} parent=0 // pred_region
    _
  $region13: #{tpu_custom_call.1} parent=0 // pred_fallthru
    _
  %v15 = vld [vmem:[%s0] sm:$0xff]
  %v16 = vld [vmem:[%s1] sm:$0xff]
  %v17 = vld [vmem:[%s1 + $0x8] sm:$0xff]
  %v18 = vld [vmem:[%s1 + $0x10] sm:$0xff]
  %v19 = vld [vmem:[%s1 + $0x18] sm:$0xff]
  %s20 = sld [smem:[#allocation2]]
  %v21 = vstv %s20
  %vm22 = vcmask 261120
  %v24 = vsel %vm22, %v15, 0
  %26 = vmatprep.subr.mxu0 0.0
  %27 = vmatpush1.msra.mxu0 0.0
  %28 = vmatprep.subr.mxu0 0.0
  %29 = vmatpush1.msra.mxu0 0.0
  %30 = vmatprep.subr.mxu0 0.0
  %31 = vmatpush1.msra.mxu0 0.0
  %32 = vmatprep.subr.mxu0 0.0
  %33 = vmatpush1.msra.mxu0 0.0
  %34 = vmatprep.subr.mxu0 0.0
  %35 = vmatpush1.msra.mxu0 0.0
  %36 = vmatprep.subr.mxu0 0.0
  %37 = vmatpush1.msra.mxu0 0.0
  %38 = vmatprep.subr.mxu0 0.0
  %39 = vmatpush1.msra.mxu0 0.0
  %40 = vmatprep.subr.mxu0 0.0
  %41 = vmatpush1.msra.mxu0 0.0
  %42 = vmatprep.subr.mxu0 0.0
  %43 = vmatpush1.msra.mxu0 0.0
  %44 = vmatprep.subr.mxu0 0.0
  %45 = vmatpush1.msra.mxu0 0.0
  %46 = vmatprep.subr.mxu0 0.0
  %47 = vmatpush1.msra.mxu0 0.0
  %48 = vmatprep.subr.mxu0 0.0
  %49 = vmatpush1.msra.mxu0 0.0
  %50 = vmatprep.subr.mxu0 0.0
  %51 = vmatpush1.msra.mxu0 %v19
  %52 = vmatprep.subr.mxu0 0.0
  %53 = vmatpush1.msra.mxu0 %v18
  %54 = vmatprep.subr.mxu0 0.0
  %55 = vmatpush1.msra.mxu0 %v17
  %56 = vmatprep.subr.mxu0 0.0
  %57 = vmatpush1.msra.mxu0 %v16
  %58 = vmatprep.subr.mxu0 0.0
  %59 = vmatpush2.msra.mxu0 0.0
  %60 = vmatprep.subr.mxu0 0.0
  %61 = vmatpush2.msra.mxu0 0.0
  %62 = vmatprep.subr.mxu0 0.0
  %63 = vmatpush2.msra.mxu0 0.0
  %64 = vmatprep.subr.mxu0 0.0
  %65 = vmatpush2.msra.mxu0 0.0
  %66 = vmatprep.subr.mxu0 0.0
  %67 = vmatpush2.msra.mxu0 0.0
  %68 = vmatprep.subr.mxu0 0.0
  %69 = vmatpush2.msra.mxu0 0.0
  %70 = vmatprep.subr.mxu0 0.0
  %71 = vmatpush2.msra.mxu0 0.0
  %72 = vmatprep.subr.mxu0 0.0
  %73 = vmatpush2.msra.mxu0 0.0
  %74 = vmatprep.subr.mxu0 0.0
  %75 = vmatpush2.msra.mxu0 0.0
  %76 = vmatprep.subr.mxu0 0.0
  %77 = vmatpush2.msra.mxu0 0.0
  %78 = vmatprep.subr.mxu0 0.0
  %79 = vmatpush2.msra.mxu0 0.0
  %80 = vmatprep.subr.mxu0 0.0
  %81 = vmatpush2.msra.mxu0 0.0
  %82 = vmatprep.subr.mxu0 0.0
  %83 = vmatpush2.msra.mxu0 0.0
  %84 = vmatprep.subr.mxu0 0.0
  %85 = vmatpush2.msra.mxu0 0.0
  %86 = vmatprep.subr.mxu0 0.0
  %87 = vmatpush2.msra.mxu0 0.0
  %88 = vmatprep.subr.mxu0 0.0
  %89 = vmatpush2.msra.mxu0 0.0
  %90 = vmatprep.mubr.f32.mxu0 0.0
  %91 = vmatmul.mubr.f32.gmra.mxu0 %v24
  %v92 = vpop.f32.mrf.mxu0
  %v93 = vadd.f32 %v21, %v92
  %v94 = vpop.f32.mrf.mxu0
  %95 = vdwg.mxu0
  %v96 = vxor.u32 %v93, 2147483648
  %v97 = vmul.f32 %v96, 1.442695
  %v98 = vpow.pop %v97
  %v99 = vadd.f32 %v98, 1.0
  %v100 = vrcp.pop %v99
  %v101 = vmul.f32 1.0, %v100
  %vm102 = vcmask 7168
  %103 = vst.msk [vmem:[%s3] sm:$0xff] %vm102, %v101
  // Predicated region
  $region14: #{tpu_custom_call.1} parent=0 // pred_check
    _
  $region15: #{tpu_custom_call.1} parent=0 // pred_check_branch
    %105 = sbr.rel (0) target = $region17
  $region16: #{tpu_custom_call.1} parent=0 // pred_region
    _
  $region17: #{tpu_custom_call.1} parent=0 // pred_fallthru
    _
  // Predicated region
  $region18: #{tpu_custom_call.1} parent=0 // pred_check
    _
  $region19: #{tpu_custom_call.1} parent=0 // pred_check_branch
    %107 = sbr.rel (0) target = $region21
  $region20: #{tpu_custom_call.1} parent=0 // pred_region
    _
  $region21: #{tpu_custom_call.1} parent=0 // pred_fallthru
    _

</llo_original>
